<compile_context>
chip_gen: v7x
topology: tpu7x:2x2x1
jax: 0.10.0
libtpu: 0.0.40
codegen_flags: <defaults>
</compile_context>

<pallas_src>
import jax
import jax.numpy as jnp
from jax import lax
from jax.experimental import pallas as pl
from jax.experimental.pallas import tpu as pltpu


def _round_up(x, m):
    return (x + m - 1) // m * m


def _pick_spatial_tile(hw, target=8192):
    """Lane-aligned spatial tile: as large as possible up to `target` lanes."""
    hw_aligned = _round_up(hw, 128)
    if hw_aligned <= target:
        return hw_aligned
    n_blocks = -(-hw_aligned // target)          # ceil divide
    return _round_up(-(-hw_aligned // n_blocks), 128)


def _fused_conv1x1_kernel(w_p_ref, w_l_ref, w_u_ref, w_s_ref, s_sign_ref,
                          x_ref, o_ref):
    """Reconstruct W = P @ (L*l_mask + I) @ (U*u_mask + diag(sign*exp(log_s)))
    and apply out = W @ x   (channels contract, spatial stays lane-dense)."""
    C = w_p_ref.shape[0]
    row = lax.broadcasted_iota(jnp.int32, (C, C), 0)
    col = lax.broadcasted_iota(jnp.int32, (C, C), 1)
    l_mask = (row > col).astype(jnp.float32)     # strictly lower triangular
    u_mask = (row < col).astype(jnp.float32)     # strictly upper triangular
    eye = (row == col).astype(jnp.float32)

    log_s = w_s_ref[...]        # (1, C) == log|s|
    s_sign = s_sign_ref[...]    # (1, C)

    L = w_l_ref[...] * l_mask + eye
    # diag(sign * exp(log_s)): eye * row-vector broadcasts onto the diagonal
    U = w_u_ref[...] * u_mask + eye * (s_sign * jnp.exp(log_s))

    W = jnp.dot(w_p_ref[...],
                jnp.dot(L, U, preferred_element_type=jnp.float32),
                preferred_element_type=jnp.float32)

    # (C, C) @ (C, tile_s) -> (C, tile_s); output last dim is a multiple of 128.
    o_ref[...] = jnp.dot(W, x_ref[...].astype(jnp.float32),
                         preferred_element_type=jnp.float32).astype(o_ref.dtype)


def inv_conv2d_lu_forward(x, w_p, w_l, w_u, w_s, s_sign, target_tile=8192):
    """Forward pass of InvConv2dLU. x is NCHW (PyTorch convention)."""
    N, C, H, W = x.shape
    HW = H * W

    # (N, C, H, W) -> (N, C, H*W): free contiguous reshape, no transpose.
    x3 = x.reshape(N, C, HW)

    tile_s = _pick_spatial_tile(HW, target_tile)
    hw_pad = _round_up(HW, tile_s)
    if hw_pad != HW:
        x3 = jnp.pad(x3, ((0, 0), (0, 0), (0, hw_pad - HW)))
    n_s_blocks = hw_pad // tile_s

    const_cc = pl.BlockSpec((C, C), lambda n, s: (0, 0))
    const_1c = pl.BlockSpec((1, C), lambda n, s: (0, 0))

    out3 = pl.pallas_call(
        _fused_conv1x1_kernel,
        out_shape=jax.ShapeDtypeStruct((N, C, hw_pad), x.dtype),
        grid_spec=pltpu.PrefetchScalarGridSpec(
            num_scalar_prefetch=0,
            grid=(N, n_s_blocks),
            in_specs=[
                const_cc,                                            # w_p
                const_cc,                                            # w_l
                const_cc,                                            # w_u
                const_1c,                                            # log|s|
                const_1c,                                            # sign(s)
                pl.BlockSpec((None, C, tile_s), lambda n, s: (n, 0, s)),  # x
            ],
            out_specs=pl.BlockSpec((None, C, tile_s), lambda n, s: (n, 0, s)),
        ),
        compiler_params=pltpu.CompilerParams(
            dimension_semantics=("parallel", "parallel")),
    )(w_p, w_l, w_u, w_s.reshape(1, C), s_sign.reshape(1, C), x3)

    out = out3[:, :, :HW].reshape(N, C, H, W)
    # Scalar logdet of a length-C vector: plain JAX (no Pallas launch needed).
    logdet = (H * W) * jnp.sum(w_s)
    return out, logdet


def _reference_forward(x, w_p, w_l, w_u, w_s, s_sign):
    """Plain-JAX reference mirroring the PyTorch module."""
    C = w_p.shape[0]
    u_mask = jnp.triu(jnp.ones((C, C), jnp.float32), 1)
    l_mask = u_mask.T
    eye = jnp.eye(C, dtype=jnp.float32)
    weight = w_p @ (w_l * l_mask + eye) @ (w_u * u_mask
                                           + jnp.diag(s_sign * jnp.exp(w_s)))
    out = jnp.einsum("nchw,oc->nohw", x, weight)
    logdet = x.shape[2] * x.shape[3] * jnp.sum(w_s)
    return out, logdet


if __name__ == "__main__":
    hidden_size = 4                      # channel count of the 1x1 conv
    key = jax.random.PRNGKey(0)
    k_w, k_x = jax.random.split(key)

    # Deterministic parameter init mirroring the module's __init__:
    # random matrix -> QR -> LU of the orthogonal factor.
    w0 = jax.random.normal(k_w, (hidden_size, hidden_size), dtype=jnp.float32)
    q, _ = jnp.linalg.qr(w0)
    w_p, w_l, u_full = jax.scipy.linalg.lu(q)
    w_s_diag = jnp.diag(u_full)
    w_u = jnp.triu(u_full, 1)
    s_sign = jnp.sign(w_s_diag)
    w_s = jnp.log(jnp.abs(w_s_diag))     # nn.Parameter(logabs(w_s))

    # Input: NCHW, batch=2, channels=hidden_size, spatial=16x16
    x = jax.random.normal(k_x, (2, hidden_size, 16, 16), dtype=jnp.float32)

    out, logdet = inv_conv2d_lu_forward(x, w_p, w_l, w_u, w_s, s_sign)
    out, logdet = jax.block_until_ready((out, logdet))

    out_ref, logdet_ref = _reference_forward(x, w_p, w_l, w_u, w_s, s_sign)
    assert out.shape == (2, hidden_size, 16, 16)
    assert jnp.allclose(out, out_ref, atol=1e-4, rtol=1e-4)
    assert jnp.allclose(logdet, logdet_ref, atol=1e-4, rtol=1e-4)

    print("KERNEL_OK")
</pallas_src>

<mosaic_0001>
module attributes {stable_mosaic.version = 11 : i64} {
  func.func @_fused_conv1x1_kernel(%arg0: i32, %arg1: i32, %arg2: memref<4x4xf32, #tpu.memory_space<vmem>>, %arg3: memref<4x4xf32, #tpu.memory_space<vmem>>, %arg4: memref<4x4xf32, #tpu.memory_space<vmem>>, %arg5: memref<1x4xf32, #tpu.memory_space<vmem>>, %arg6: memref<1x4xf32, #tpu.memory_space<vmem>>, %arg7: memref<1x4x256xf32, #tpu.memory_space<vmem>>, %arg8: memref<1x4x256xf32, #tpu.memory_space<vmem>>) attributes {dimension_semantics = [#tpu.dimension_semantics<parallel>, #tpu.dimension_semantics<parallel>], iteration_bounds = array<i64: 2, 1>, scalar_prefetch = 0 : i64, scratch_operands = 0 : i64, tpu.core_type = #tpu.core_type<tc>, window_params = [{pipeline_mode = #tpu.pipeline_mode<synchronous>, transform_indices = @transform_0, window_bounds = array<i64: 4, 4>}, {pipeline_mode = #tpu.pipeline_mode<synchronous>, transform_indices = @transform_1, window_bounds = array<i64: 4, 4>}, {pipeline_mode = #tpu.pipeline_mode<synchronous>, transform_indices = @transform_2, window_bounds = array<i64: 4, 4>}, {pipeline_mode = #tpu.pipeline_mode<synchronous>, transform_indices = @transform_3, window_bounds = array<i64: 1, 4>}, {pipeline_mode = #tpu.pipeline_mode<synchronous>, transform_indices = @transform_4, window_bounds = array<i64: 1, 4>}, {transform_indices = @transform_5, window_bounds = array<i64: 1, 4, 256>}, {transform_indices = @transform_6, window_bounds = array<i64: 1, 4, 256>}]} {
    %0 = tpu.iota {dimensions = array<i32: 0>} : vector<4x4xi32>
    %1 = tpu.iota {dimensions = array<i32: 1>} : vector<4x4xi32>
    %2 = arith.cmpi sgt, %0, %1 : vector<4x4xi32>
    %3 = arith.extui %2 : vector<4x4xi1> to vector<4x4xi32>
    %4 = arith.sitofp %3 : vector<4x4xi32> to vector<4x4xf32>
    %5 = arith.cmpi slt, %0, %1 : vector<4x4xi32>
    %6 = arith.extui %5 : vector<4x4xi1> to vector<4x4xi32>
    %7 = arith.sitofp %6 : vector<4x4xi32> to vector<4x4xf32>
    %8 = arith.cmpi eq, %0, %1 : vector<4x4xi32>
    %9 = arith.extui %8 : vector<4x4xi1> to vector<4x4xi32>
    %10 = arith.sitofp %9 : vector<4x4xi32> to vector<4x4xf32>
    %c0 = arith.constant 0 : index
    %c0_0 = arith.constant 0 : index
    %11 = vector.load %arg5[%c0, %c0_0] : memref<1x4xf32, #tpu.memory_space<vmem>>, vector<1x4xf32>
    %c0_1 = arith.constant 0 : index
    %c0_2 = arith.constant 0 : index
    %12 = vector.load %arg6[%c0_1, %c0_2] : memref<1x4xf32, #tpu.memory_space<vmem>>, vector<1x4xf32>
    %c0_3 = arith.constant 0 : index
    %c0_4 = arith.constant 0 : index
    %13 = vector.load %arg3[%c0_3, %c0_4] : memref<4x4xf32, #tpu.memory_space<vmem>>, vector<4x4xf32>
    %14 = arith.mulf %13, %4 : vector<4x4xf32>
    %15 = arith.addf %14, %10 : vector<4x4xf32>
    %c0_5 = arith.constant 0 : index
    %c0_6 = arith.constant 0 : index
    %16 = vector.load %arg4[%c0_5, %c0_6] : memref<4x4xf32, #tpu.memory_space<vmem>>, vector<4x4xf32>
    %17 = arith.mulf %16, %7 : vector<4x4xf32>
    %18 = math.exp %11 : vector<1x4xf32>
    %19 = arith.mulf %12, %18 : vector<1x4xf32>
    %20 = vector.broadcast %19 : vector<1x4xf32> to vector<4x4xf32>
    %21 = arith.mulf %10, %20 : vector<4x4xf32>
    %22 = arith.addf %17, %21 : vector<4x4xf32>
    %c0_7 = arith.constant 0 : index
    %c0_8 = arith.constant 0 : index
    %23 = vector.load %arg2[%c0_7, %c0_8] : memref<4x4xf32, #tpu.memory_space<vmem>>, vector<4x4xf32>
    %cst = arith.constant dense<0.000000e+00> : vector<4x4xf32>
    %24 = tpu.matmul %15, %22, %cst {dimension_numbers = #tpu.dot_dimension_numbers<[1], [0], [0], [1], [0, 0, 1, 1], [], []>} : vector<4x4xf32>, vector<4x4xf32>, vector<4x4xf32> -> vector<4x4xf32>
    %cst_9 = arith.constant dense<0.000000e+00> : vector<4x4xf32>
    %25 = tpu.matmul %23, %24, %cst_9 {dimension_numbers = #tpu.dot_dimension_numbers<[1], [0], [0], [1], [0, 0, 1, 1], [], []>} : vector<4x4xf32>, vector<4x4xf32>, vector<4x4xf32> -> vector<4x4xf32>
    %c0_10 = arith.constant 0 : index
    %c0_11 = arith.constant 0 : index
    %c0_12 = arith.constant 0 : index
    %26 = vector.load %arg7[%c0_10, %c0_11, %c0_12] : memref<1x4x256xf32, #tpu.memory_space<vmem>>, vector<1x4x256xf32>
    %27 = vector.shape_cast %26 : vector<1x4x256xf32> to vector<4x256xf32>
    %cst_13 = arith.constant dense<0.000000e+00> : vector<4x256xf32>
    %28 = tpu.matmul %25, %27, %cst_13 {dimension_numbers = #tpu.dot_dimension_numbers<[1], [0], [0], [1], [0, 0, 1, 1], [], []>} : vector<4x4xf32>, vector<4x256xf32>, vector<4x256xf32> -> vector<4x256xf32>
    %c0_14 = arith.constant 0 : index
    %c0_15 = arith.constant 0 : index
    %c0_16 = arith.constant 0 : index
    %29 = vector.load %arg8[%c0_14, %c0_15, %c0_16] : memref<1x4x256xf32, #tpu.memory_space<vmem>>, vector<1x4x256xf32>
    %30 = vector.shape_cast %29 : vector<1x4x256xf32> to vector<4x256xf32>
    %31 = vector.shape_cast %28 : vector<4x256xf32> to vector<1x4x256xf32>
    tpu.vector_store %arg8[%c0_14, %c0_15, %c0_16], %31 {strides = array<i32>} : memref<1x4x256xf32, #tpu.memory_space<vmem>>, vector<1x4x256xf32>,
    return
  }
  func.func @transform_0(%arg0: i32, %arg1: i32) -> (i32, i32) {
    %c0_i32 = arith.constant 0 : i32
    %c0_i32_0 = arith.constant 0 : i32
    %c0_i32_1 = arith.constant 0 : i32
    return %c0_i32, %c0_i32_0 : i32, i32
  }
  func.func @transform_1(%arg0: i32, %arg1: i32) -> (i32, i32) {
    %c0_i32 = arith.constant 0 : i32
    %c0_i32_0 = arith.constant 0 : i32
    %c0_i32_1 = arith.constant 0 : i32
    return %c0_i32, %c0_i32_0 : i32, i32
  }
  func.func @transform_2(%arg0: i32, %arg1: i32) -> (i32, i32) {
    %c0_i32 = arith.constant 0 : i32
    %c0_i32_0 = arith.constant 0 : i32
    %c0_i32_1 = arith.constant 0 : i32
    return %c0_i32, %c0_i32_0 : i32, i32
  }
  func.func @transform_3(%arg0: i32, %arg1: i32) -> (i32, i32) {
    %c0_i32 = arith.constant 0 : i32
    %c0_i32_0 = arith.constant 0 : i32
    %c0_i32_1 = arith.constant 0 : i32
    return %c0_i32, %c0_i32_0 : i32, i32
  }
  func.func @transform_4(%arg0: i32, %arg1: i32) -> (i32, i32) {
    %c0_i32 = arith.constant 0 : i32
    %c0_i32_0 = arith.constant 0 : i32
    %c0_i32_1 = arith.constant 0 : i32
    return %c0_i32, %c0_i32_0 : i32, i32
  }
  func.func @transform_5(%arg0: i32, %arg1: i32) -> (i32, i32, i32) {
    %c0_i32 = arith.constant 0 : i32
    %c0_i32_0 = arith.constant 0 : i32
    return %arg0, %c0_i32, %arg1 : i32, i32, i32
  }
  func.func @transform_6(%arg0: i32, %arg1: i32) -> (i32, i32, i32) {
    %c0_i32 = arith.constant 0 : i32
    %c0_i32_0 = arith.constant 0 : i32
    return %arg0, %c0_i32, %arg1 : i32, i32, i32
  }
}

</mosaic_0001>

<llo_original>
// kernel: tpu_custom_call.1
$region0: #{tpu_custom_call.1}
  #allocation0 [shape = 'u32[]', space=smem, size = 0x4, offset = 0x4, fixed_abs, tag = 'smem constant byte address 0x4 - core index']
  #allocation1 [shape = 'u32[144,128]{1,0:T(1,128)}', space=vmem, size = 0x12000, scoped, tag = 'internal scratch']
  %s0 = inlined_call_operand.hbm [shape: f32[4,4], index: 0, kind: input, shape index: {}]
  %s1 = inlined_call_operand.hbm [shape: f32[4,4], index: 1, kind: input, shape index: {}]
  %s2 = inlined_call_operand.hbm [shape: f32[4,4], index: 2, kind: input, shape index: {}]
  %s3 = inlined_call_operand.vmem [shape: f32[1,4], index: 3, kind: input, shape index: {}]
  %s4 = inlined_call_operand.vmem [shape: f32[1,4], index: 4, kind: input, shape index: {}]
  %s5 = inlined_call_operand.vmem [shape: f32[2,4,256], index: 5, kind: input, shape index: {}]
  %s6 = inlined_call_operand.hbm [shape: f32[2,4,256], index: 6, kind: output, shape index: {}]
  %s7 = sld [smem:[#allocation0]]
  $region69: #{tpu_custom_call.1} parent=0
    _
  %s9 = ssub.s32 1, %s7
  %s10 = scalar_select 0, %s9, %s7
  $region1: #{tpu_custom_call.1} parent=0
    #allocation2 [shape = 'u8[2048]{0}', space=vmem, size = 0x800, scoped, tag = 'input window, operand 0, single buffered']
    #allocation3 [shape = 's32[2]{0}', space=sflag, size = 0x8, scoped, tag = 'scoped memory for tpu_custom_call.1']
    #allocation4 [shape = 's32[2]{0}', space=sflag, size = 0x8, scoped, tag = 'scoped memory for tpu_custom_call.1']
    #allocation5 [shape = 'u8[2048]{0}', space=vmem, size = 0x800, scoped, tag = 'input window, operand 1, single buffered']
    #allocation6 [shape = 's32[1]{0}', space=sflag, size = 0x4, scoped, tag = 'scoped memory for tpu_custom_call.1']
    #allocation7 [shape = 'u8[2048]{0}', space=vmem, size = 0x800, scoped, tag = 'input window, operand 2, single buffered']
    #allocation8 [shape = 'u8[8192]{0}', space=vmem, size = 0x2000, scoped, tag = 'output window, operand 0']
    %11 = vsyncpa [#allocation3], 0
    %12 = vsyncpa [#allocation6], 0
    %13 = vsyncpa [#allocation4], 0
    %s14 = scalar_lea.sflag [#allocation4], 1
    %15 = vsyncpa %s14, 0
    loop: start=0, step=1, limit=4
    $region2: #{tpu_custom_call.1} parent=1 // loop_pre_header
      _
    $region3: #{tpu_custom_call.1} parent=1 // loop_header
      %s17 = sphi 0, %s21
      %p18 = scmp.ge.s32.totalorder %s17, 4
      %s24 = sphi 0, %s36
      %s25 = sphi 0, %s32
      %s26 = sphi 0, %s24
      %s27 = sphi 0, %s25
      %s28 = sphi 0, %s26
      %s29 = sphi 0, %s27
      %s37 = sphi 0, %s37
      %s39 = sphi 0, %s37
      %s40 = sphi 0, %s39
      %s54 = sphi 0, %s40
      %s58 = sphi 0, %s58
      %s60 = sphi 0, %s58
      %s61 = sphi 0, %s60
      %s75 = sphi 0, %s61
      %s79 = sphi 0, %s79
      %s81 = sphi 0, %s79
      %s82 = sphi 0, %s81
      %s96 = sphi 0, %s82
      %s100 = sphi 0, %s100
      %s102 = sphi 0, %s100
      %s103 = sphi 0, %s102
      %s117 = sphi 0, %s103
      %s121 = sphi 0, %s121
      %s123 = sphi 0, %s121
      %s124 = sphi 0, %s123
      %s138 = sphi 0, %s124
      %s146 = sphi 0, %s148
      %s149 = sphi 0, %s146
      %s150 = sphi 0, %s149
      %s166 = sphi 0, %s150
      %s174 = sphi 0, %s176
      %s177 = sphi 0, %s174
      %s178 = sphi 0, %s177
      %s194 = sphi 0, %s178
    $region4: #{tpu_custom_call.1} parent=1 // loop_header_branch
      %20 = sbr.rel (%p18) target = $region8
    $region5: #{tpu_custom_call.1} parent=1 // loop_body
      %s22 = ssub.s32 %s17, 1
      %s23 = ssub.s32 %s17, 2
      %s30 = sadd.s32 1, %s25
      %p31 = scmp.ge.s32.totalorder %s30, 1
      %s32 = scalar_select %p31, 0, %s30
      %s33 = sadd.s32 1, %s24
      %s34 = scalar_select %p31, %s33, %s24
      %p35 = scmp.ge.s32.totalorder %s34, 2
      %s36 = scalar_select %p35, 0, %s34
      %s38 = sadd.s32 %s37, 1
      %p41 = scmp.eq.s32.totalorder %s17, 1
      %p42 = scmp.ne.s32.totalorder %s37, %s39
      %p43 = scmp.eq.s32.totalorder %s17, 0
      %p44 = por %p42, %p43
      %p45 = scmp.ne.s32.totalorder %s37, %s39
      %p46 = scmp.eq.s32.totalorder %s22, 1
      %p47 = por %p45, %p46
      %p48 = scmp.ne.s32.totalorder %s39, %s40
      %p49 = scmp.eq.s32.totalorder %s22, 0
      %p50 = por %p48, %p49
      %p51 = scmp.ne.s32.totalorder %s39, %s40
      %p52 = scmp.eq.s32.totalorder %s23, 1
      %p53 = por %p51, %p52
      %p55 = scmp.ne.s32.totalorder %s40, %s54
      %p56 = scmp.eq.s32.totalorder %s23, 0
      %p57 = por %p55, %p56
      %s59 = sadd.s32 %s58, 1
      %p62 = scmp.eq.s32.totalorder %s17, 1
      %p63 = scmp.ne.s32.totalorder %s58, %s60
      %p64 = scmp.eq.s32.totalorder %s17, 0
      %p65 = por %p63, %p64
      %p66 = scmp.ne.s32.totalorder %s58, %s60
      %p67 = scmp.eq.s32.totalorder %s22, 1
      %p68 = por %p66, %p67
      %p69 = scmp.ne.s32.totalorder %s60, %s61
      %p70 = scmp.eq.s32.totalorder %s22, 0
      %p71 = por %p69, %p70
      %p72 = scmp.ne.s32.totalorder %s60, %s61
      %p73 = scmp.eq.s32.totalorder %s23, 1
      %p74 = por %p72, %p73
      %p76 = scmp.ne.s32.totalorder %s61, %s75
      %p77 = scmp.eq.s32.totalorder %s23, 0
      %p78 = por %p76, %p77
      %s80 = sadd.s32 %s79, 1
      %p83 = scmp.eq.s32.totalorder %s17, 1
      %p84 = scmp.ne.s32.totalorder %s79, %s81
      %p85 = scmp.eq.s32.totalorder %s17, 0
      %p86 = por %p84, %p85
      %p87 = scmp.ne.s32.totalorder %s79, %s81
      %p88 = scmp.eq.s32.totalorder %s22, 1
      %p89 = por %p87, %p88
      %p90 = scmp.ne.s32.totalorder %s81, %s82
      %p91 = scmp.eq.s32.totalorder %s22, 0
      %p92 = por %p90, %p91
      %p93 = scmp.ne.s32.totalorder %s81, %s82
      %p94 = scmp.eq.s32.totalorder %s23, 1
      %p95 = por %p93, %p94
      %p97 = scmp.ne.s32.totalorder %s82, %s96
      %p98 = scmp.eq.s32.totalorder %s23, 0
      %p99 = por %p97, %p98
      %s101 = sadd.s32 %s100, 1
      %p104 = scmp.eq.s32.totalorder %s17, 1
      %p105 = scmp.ne.s32.totalorder %s100, %s102
      %p106 = scmp.eq.s32.totalorder %s17, 0
      %p107 = por %p105, %p106
      %p108 = scmp.ne.s32.totalorder %s100, %s102
      %p109 = scmp.eq.s32.totalorder %s22, 1
      %p110 = por %p108, %p109
      %p111 = scmp.ne.s32.totalorder %s102, %s103
      %p112 = scmp.eq.s32.totalorder %s22, 0
      %p113 = por %p111, %p112
      %p114 = scmp.ne.s32.totalorder %s102, %s103
      %p115 = scmp.eq.s32.totalorder %s23, 1
      %p116 = por %p114, %p115
      %p118 = scmp.ne.s32.totalorder %s103, %s117
      %p119 = scmp.eq.s32.totalorder %s23, 0
      %p120 = por %p118, %p119
      %s122 = sadd.s32 %s121, 1
      %p125 = scmp.eq.s32.totalorder %s17, 1
      %p126 = scmp.ne.s32.totalorder %s121, %s123
      %p127 = scmp.eq.s32.totalorder %s17, 0
      %p128 = por %p126, %p127
      %p129 = scmp.ne.s32.totalorder %s121, %s123
      %p130 = scmp.eq.s32.totalorder %s22, 1
      %p131 = por %p129, %p130
      %p132 = scmp.ne.s32.totalorder %s123, %s124
      %p133 = scmp.eq.s32.totalorder %s22, 0
      %p134 = por %p132, %p133
      %p135 = scmp.ne.s32.totalorder %s123, %s124
      %p136 = scmp.eq.s32.totalorder %s23, 1
      %p137 = por %p135, %p136
      %p139 = scmp.ne.s32.totalorder %s124, %s138
      %p140 = scmp.eq.s32.totalorder %s23, 0
      %p141 = por %p139, %p140
      %s142 = ssub.s32 %s24, %s36
      %s143 = ssub.s32 %s25, %s32
      %s144 = sor.u32 %s142, %s143
      %p145 = scmp.eq.s32.totalorder %s144, 0
      %s147 = sadd.s32 %s146, 1
      %s148 = scalar_select %p145, %s146, %s147
      %p151 = pneg %p145
      %p152 = scmp.eq.s32.totalorder %s17, 1
      %p153 = por %p151, %p152
      %p154 = scmp.ne.s32.totalorder %s146, %s149
      %p155 = scmp.eq.s32.totalorder %s17, 0
      %p156 = por %p154, %p155
      %p157 = scmp.ne.s32.totalorder %s146, %s149
      %p158 = scmp.eq.s32.totalorder %s22, 1
      %p159 = por %p157, %p158
      %p160 = scmp.ne.s32.totalorder %s149, %s150
      %p161 = scmp.eq.s32.totalorder %s22, 0
      %p162 = por %p160, %p161
      %p163 = scmp.ne.s32.totalorder %s149, %s150
      %p164 = scmp.eq.s32.totalorder %s23, 1
      %p165 = por %p163, %p164
      %p167 = scmp.ne.s32.totalorder %s150, %s166
      %p168 = scmp.eq.s32.totalorder %s23, 0
      %p169 = por %p167, %p168
      %s170 = ssub.s32 %s24, %s36
      %s171 = ssub.s32 %s25, %s32
      %s172 = sor.u32 %s170, %s171
      %p173 = scmp.eq.s32.totalorder %s172, 0
      %s175 = sadd.s32 %s174, 1
      %s176 = scalar_select %p173, %s174, %s175
      %p179 = pneg %p173
      %p180 = scmp.eq.s32.totalorder %s17, 1
      %p181 = por %p179, %p180
      %p182 = scmp.ne.s32.totalorder %s174, %s177
      %p183 = scmp.eq.s32.totalorder %s17, 0
      %p184 = por %p182, %p183
      %p185 = scmp.ne.s32.totalorder %s174, %s177
      %p186 = scmp.eq.s32.totalorder %s22, 1
      %p187 = por %p185, %p186
      %p188 = scmp.ne.s32.totalorder %s177, %s178
      %p189 = scmp.eq.s32.totalorder %s22, 0
      %p190 = por %p188, %p189
      %p191 = scmp.ne.s32.totalorder %s177, %s178
      %p192 = scmp.eq.s32.totalorder %s23, 1
      %p193 = por %p191, %p192
      %p195 = scmp.ne.s32.totalorder %s178, %s194
      %p196 = scmp.eq.s32.totalorder %s23, 0
      %p197 = por %p195, %p196
      %p198 = scmp.le.s32.totalorder 1, %s17
      %p199 = scmp.lt.s32.totalorder %s17, 3
      %p200 = pnand %p198, %p199
      %p201 = pneg %p200
      // Predicated region
      $region9: #{tpu_custom_call.1} parent=5 // pred_check
        _
      $region10: #{tpu_custom_call.1} parent=5 // pred_check_branch
        %203 = sbr.rel (%p200) target = $region12
      $region11: #{tpu_custom_call.1} parent=5 // pred_region
        %s204 = ssub.s32 %s17, 1
        // Predicated region
        $region13: #{tpu_custom_call.1} parent=11 // pred_check
          %p205 = pneg %p50
        $region14: #{tpu_custom_call.1} parent=11 // pred_check_branch
          %207 = sbr.rel (%p205) target = $region16
        $region15: #{tpu_custom_call.1} parent=11 // pred_region
          %s209 = ssub.s32 64, 64
          %210 = vsyncadd [#allocation3], %s209
          %s212 = sshll.u32 [#allocation2], 4
          %s213 = int_to_ptr.vmem [resolvable:$true] %s212
          %215 = dma.hbm_to_vmem [thread:$0]  %s0, 64, %s213, [#allocation3]
        $region16: #{tpu_custom_call.1} parent=11 // pred_fallthru
          _
        // Predicated region
        $region17: #{tpu_custom_call.1} parent=11 // pred_check
          %p216 = pneg %p71
        $region18: #{tpu_custom_call.1} parent=11 // pred_check_branch
          %218 = sbr.rel (%p216) target = $region20
        $region19: #{tpu_custom_call.1} parent=11 // pred_region
          %s220 = ssub.s32 64, 64
          %221 = vsyncadd [#allocation6], %s220
          %s223 = sshll.u32 [#allocation5], 4
          %s224 = int_to_ptr.vmem [resolvable:$true] %s223
          %226 = dma.hbm_to_vmem [thread:$0]  %s1, 64, %s224, [#allocation6]
        $region20: #{tpu_custom_call.1} parent=11 // pred_fallthru
          _
        // Predicated region
        $region21: #{tpu_custom_call.1} parent=11 // pred_check
          %p227 = pneg %p92
        $region22: #{tpu_custom_call.1} parent=11 // pred_check_branch
          %229 = sbr.rel (%p227) target = $region24
        $region23: #{tpu_custom_call.1} parent=11 // pred_region
          %s231 = ssub.s32 64, 64
          %232 = vsyncadd [#allocation6], %s231
          %s234 = sshll.u32 [#allocation7], 4
          %s235 = int_to_ptr.vmem [resolvable:$true] %s234
          %237 = dma.hbm_to_vmem [thread:$0]  %s2, 64, %s235, [#allocation6]
        $region24: #{tpu_custom_call.1} parent=11 // pred_fallthru
          _
        // Predicated region
        $region25: #{tpu_custom_call.1} parent=11 // pred_check
          %p238 = pneg %p113
        $region26: #{tpu_custom_call.1} parent=11 // pred_check_branch
          %240 = sbr.rel (%p238) target = $region28
        $region27: #{tpu_custom_call.1} parent=11 // pred_region
          _
        $region28: #{tpu_custom_call.1} parent=11 // pred_fallthru
          _
        // Predicated region
        $region29: #{tpu_custom_call.1} parent=11 // pred_check
          %p241 = pneg %p134
        $region30: #{tpu_custom_call.1} parent=11 // pred_check_branch
          %243 = sbr.rel (%p241) target = $region32
        $region31: #{tpu_custom_call.1} parent=11 // pred_region
          _
        $region32: #{tpu_custom_call.1} parent=11 // pred_fallthru
          _
      $region12: #{tpu_custom_call.1} parent=5 // pred_fallthru
        _
      %p244 = scmp.lt.s32.totalorder %s17, 2
      // Predicated region
      $region33: #{tpu_custom_call.1} parent=5 // pred_check
        %p245 = pneg %p244
      $region34: #{tpu_custom_call.1} parent=5 // pred_check_branch
        %247 = sbr.rel (%p245) target = $region36
      $region35: #{tpu_custom_call.1} parent=5 // pred_region
        // Predicated region
        $region37: #{tpu_custom_call.1} parent=35 // pred_check
          %p248 = pneg %p156
        $region38: #{tpu_custom_call.1} parent=35 // pred_check_branch
          %250 = sbr.rel (%p248) target = $region40
        $region39: #{tpu_custom_call.1} parent=35 // pred_region
          %s251 = smul.u32 2, %s25
          %p252 = scmp.lt.s32.totalorder %s24, 1
          %s253 = scalar_select %p252, %s24, 1
          %p254 = scmp.lt.s32.totalorder %s251, 1
          %s255 = scalar_select %p254, %s251, 1
          %s256 = smul.addr %s253, 2
          %s257 = sadd.s32 %s255, %s256
          %s258 = smul.addr %s257, 4
          %s259 = scalar_lea.vmem %s5, %s258
          %s260 = smul.u32 2, %s25
        $region40: #{tpu_custom_call.1} parent=35 // pred_fallthru
          _
      $region36: #{tpu_custom_call.1} parent=5 // pred_fallthru
        _
      %p261 = scmp.le.s32.totalorder 1, %s17
      %p262 = scmp.lt.s32.totalorder %s17, 3
      %p263 = pnand %p261, %p262
      %p264 = pneg %p263
      // Predicated region
      $region41: #{tpu_custom_call.1} parent=5 // pred_check
        _
      $region42: #{tpu_custom_call.1} parent=5 // pred_check_branch
        %266 = sbr.rel (%p263) target = $region44
      $region43: #{tpu_custom_call.1} parent=5 // pred_region
        %s267 = ssub.s32 %s17, 1
        // Predicated region
        $region45: #{tpu_custom_call.1} parent=43 // pred_check
          %p268 = pneg %p50
        $region46: #{tpu_custom_call.1} parent=43 // pred_check_branch
          %270 = sbr.rel (%p268) target = $region48
        $region47: #{tpu_custom_call.1} parent=43 // pred_region
          %271 = dma.done [#allocation3], 64
        $region48: #{tpu_custom_call.1} parent=43 // pred_fallthru
          _
        // Predicated region
        $region49: #{tpu_custom_call.1} parent=43 // pred_check
          %p272 = pneg %p71
        $region50: #{tpu_custom_call.1} parent=43 // pred_check_branch
          %274 = sbr.rel (%p272) target = $region52
        $region51: #{tpu_custom_call.1} parent=43 // pred_region
          %275 = dma.done [#allocation6], 64
        $region52: #{tpu_custom_call.1} parent=43 // pred_fallthru
          _
        // Predicated region
        $region53: #{tpu_custom_call.1} parent=43 // pred_check
          %p276 = pneg %p92
        $region54: #{tpu_custom_call.1} parent=43 // pred_check_branch
          %278 = sbr.rel (%p276) target = $region56
        $region55: #{tpu_custom_call.1} parent=43 // pred_region
          %279 = dma.done [#allocation6], 64
        $region56: #{tpu_custom_call.1} parent=43 // pred_fallthru
          _
        %p280 = pneg %p50
        %p281 = pneg %p47
        %p282 = pneg %p71
        %p283 = pneg %p68
        %p284 = pneg %p92
        %p285 = pneg %p89
        %p286 = pneg %p113
        %p287 = pneg %p110
        %p288 = pneg %p134
        %p289 = pneg %p131
        %s290 = smul.u32 2, %s27
        %p291 = scmp.lt.s32.totalorder %s26, 1
        %s292 = scalar_select %p291, %s26, 1
        %p293 = scmp.lt.s32.totalorder %s290, 1
        %s294 = scalar_select %p293, %s290, 1
        %s295 = smul.addr %s292, 2
        %s296 = sadd.s32 %s294, %s295
        %s297 = smul.addr %s296, 4
        %s298 = scalar_lea.vmem %s5, %s297
        %p299 = pneg %p162
        %p300 = pneg %p159
        %p301 = pneg %p190
        %p302 = pneg %p187
        %s303 = sand.u32 %s177, 1
        %s304 = scalar_lea.sflag [#allocation4], %s303
        %s305 = sand.u32 %s177, 1
        %s306 = smul.addr %s305, 8
        %s307 = scalar_lea.vmem [#allocation8], %s306
        %s308 = smul.u32 2, %s27
        %p309 = scmp.lt.s32.totalorder %s26, 1
        %s310 = scalar_select %p309, %s26, 1
        %p311 = scmp.lt.s32.totalorder %s308, 1
        %s312 = scalar_select %p311, %s308, 1
        %s313 = smul.addr %s310, 2
        %s314 = sadd.s32 %s312, %s313
        %s315 = smul.addr %s314, 4
        %s316 = scalar_lea.vmem %s5, %s315
        %s317 = smul.u32 2, %s27
        %s318 = smul.u32 2, %s27
        %v319 = vlaneseq
        %v320 = vshrl.u32 %v319, 7
        %v321 = vlaneseq
        %v322 = vand.u32 %v321, 127
        %vm323 = vcmp.gt.s32.totalorder %v320, %v322
        %v324 = vsel %vm323, 1, 0
        %v325 = vcvt.s32.f32 %v324
        %vm326 = vcmp.lt.s32.totalorder %v320, %v322
        %v327 = vsel %vm326, 1, 0
        %v328 = vcvt.s32.f32 %v327
        %vm329 = vcmp.eq.s32.totalorder %v320, %v322
        %v330 = vsel %vm329, 1, 0
        %v331 = vcvt.s32.f32 %v330
        %v332 = vld [vmem:[%s3] sm:$0x1]
        %v333 = vld [vmem:[%s4] sm:$0x1]
        %v334 = vld [vmem:[#allocation5] sm:$0xf]
        %v335 = vmul.f32 %v334, %v325
        %v336 = vadd.f32 %v335, %v331
        %v337 = vld [vmem:[#allocation7] sm:$0xf]
        %v338 = vmul.f32 %v337, %v328
        %v339 = vmul.f32 %v332, 1.442695
        %v340 = vpow.pop %v339
        %v341 = vmul.f32 %v333, %v340
        %v343 = vlaneseq
        %v344 = vshrl.u32 %v343, 7
        %v345 = vsub.s32 0, %v344
        %v346 = vrot.slane %v341, %v345
        %v348 = vmul.f32 %v331, %v346
        %v349 = vadd.f32 %v338, %v348
        %v350 = vld [vmem:[#allocation2] sm:$0xf]
        %vm351 = vcmask 31744
        %v353 = vsel %vm351, %v336, 0
        %vm355 = vcmask 1043456
        %v357 = vsel %vm355, %v349, 0
        %359 = vmatprep.subr.mxu0 0.0
        %360 = vmatpush1.msra.mxu0 %v357
        %361 = vmatprep.subr.mxu0 0.0
        %362 = vmatpush1.msra.mxu0 0.0
        %363 = vmatprep.subr.mxu0 0.0
        %364 = vmatpush1.msra.mxu0 0.0
        %365 = vmatprep.subr.mxu0 0.0
        %366 = vmatpush1.msra.mxu0 0.0
        %367 = vmatprep.subr.mxu0 0.0
        %368 = vmatpush1.msra.mxu0 0.0
        %369 = vmatprep.subr.mxu0 0.0
        %370 = vmatpush1.msra.mxu0 0.0
        %371 = vmatprep.subr.mxu0 0.0
        %372 = vmatpush1.msra.mxu0 0.0
        %373 = vmatprep.subr.mxu0 0.0
        %374 = vmatpush1.msra.mxu0 0.0
        %375 = vmatprep.subr.mxu0 0.0
        %376 = vmatpush1.msra.mxu0 0.0
        %377 = vmatprep.subr.mxu0 0.0
        %378 = vmatpush1.msra.mxu0 0.0
        %379 = vmatprep.subr.mxu0 0.0
        %380 = vmatpush1.msra.mxu0 0.0
        %381 = vmatprep.subr.mxu0 0.0
        %382 = vmatpush1.msra.mxu0 0.0
        %383 = vmatprep.subr.mxu0 0.0
        %384 = vmatpush1.msra.mxu0 0.0
        %385 = vmatprep.subr.mxu0 0.0
        %386 = vmatpush1.msra.mxu0 0.0
        %387 = vmatprep.subr.mxu0 0.0
        %388 = vmatpush1.msra.mxu0 0.0
        %389 = vmatprep.subr.mxu0 0.0
        %390 = vmatpush1.msra.mxu0 0.0
        %391 = vmatprep.subr.mxu0 0.0
        %392 = vmatpush1.msra.mxu0 0.0
        %393 = vmatprep.subr.mxu0 0.0
        %394 = vmatpush1.msra.mxu0 0.0
        %395 = vmatprep.subr.mxu0 0.0
        %396 = vmatpush1.msra.mxu0 0.0
        %397 = vmatprep.subr.mxu0 0.0
        %398 = vmatpush1.msra.mxu0 0.0
        %399 = vmatprep.subr.mxu0 0.0
        %400 = vmatpush1.msra.mxu0 0.0
        %401 = vmatprep.subr.mxu0 0.0
        %402 = vmatpush1.msra.mxu0 0.0
        %403 = vmatprep.subr.mxu0 0.0
        %404 = vmatpush1.msra.mxu0 0.0
        %405 = vmatprep.subr.mxu0 0.0
        %406 = vmatpush1.msra.mxu0 0.0
        %407 = vmatprep.subr.mxu0 0.0
        %408 = vmatpush1.msra.mxu0 0.0
        %409 = vmatprep.subr.mxu0 0.0
        %410 = vmatpush1.msra.mxu0 0.0
        %411 = vmatprep.subr.mxu0 0.0
        %412 = vmatpush1.msra.mxu0 0.0
        %413 = vmatprep.subr.mxu0 0.0
        %414 = vmatpush1.msra.mxu0 0.0
        %415 = vmatprep.subr.mxu0 0.0
        %416 = vmatpush1.msra.mxu0 0.0
        %417 = vmatprep.subr.mxu0 0.0
        %418 = vmatpush1.msra.mxu0 0.0
        %419 = vmatprep.subr.mxu0 0.0
        %420 = vmatpush1.msra.mxu0 0.0
        %421 = vmatprep.subr.mxu0 0.0
        %422 = vmatpush1.msra.mxu0 0.0
        %423 = vmatprep.mubr.f32.mxu0 0.0
        %424 = vmatmul.mubr.f32.gmra.mrb[0].mxu0 %v353
        %v425 = vpop.f32.mrb[0].mxu0
        %v426 = vadd.f32 0.0, %v425
        %v427 = vpop.f32.mrb[0].mxu0
        %428 = vdwg.mxu0
        %v430 = vsel %vm351, %v350, 0
        %v433 = vsel %vm355, %v426, 0
        %435 = vmatprep.subr.mxu0 0.0
        %436 = vmatpush1.msra.mxu0 %v433
        %437 = vmatprep.subr.mxu0 0.0
        %438 = vmatpush1.msra.mxu0 0.0
        %439 = vmatprep.subr.mxu0 0.0
        %440 = vmatpush1.msra.mxu0 0.0
        %441 = vmatprep.subr.mxu0 0.0
        %442 = vmatpush1.msra.mxu0 0.0
        %443 = vmatprep.subr.mxu0 0.0
        %444 = vmatpush1.msra.mxu0 0.0
        %445 = vmatprep.subr.mxu0 0.0
        %446 = vmatpush1.msra.mxu0 0.0
        %447 = vmatprep.subr.mxu0 0.0
        %448 = vmatpush1.msra.mxu0 0.0
        %449 = vmatprep.subr.mxu0 0.0
        %450 = vmatpush1.msra.mxu0 0.0
        %451 = vmatprep.subr.mxu0 0.0
        %452 = vmatpush1.msra.mxu0 0.0
        %453 = vmatprep.subr.mxu0 0.0
        %454 = vmatpush1.msra.mxu0 0.0
        %455 = vmatprep.subr.mxu0 0.0
        %456 = vmatpush1.msra.mxu0 0.0
        %457 = vmatprep.subr.mxu0 0.0
        %458 = vmatpush1.msra.mxu0 0.0
        %459 = vmatprep.subr.mxu0 0.0
        %460 = vmatpush1.msra.mxu0 0.0
        %461 = vmatprep.subr.mxu0 0.0
        %462 = vmatpush1.msra.mxu0 0.0
        %463 = vmatprep.subr.mxu0 0.0
        %464 = vmatpush1.msra.mxu0 0.0
        %465 = vmatprep.subr.mxu0 0.0
        %466 = vmatpush1.msra.mxu0 0.0
        %467 = vmatprep.subr.mxu0 0.0
        %468 = vmatpush1.msra.mxu0 0.0
        %469 = vmatprep.subr.mxu0 0.0
        %470 = vmatpush1.msra.mxu0 0.0
        %471 = vmatprep.subr.mxu0 0.0
        %472 = vmatpush1.msra.mxu0 0.0
        %473 = vmatprep.subr.mxu0 0.0
        %474 = vmatpush1.msra.mxu0 0.0
        %475 = vmatprep.subr.mxu0 0.0
        %476 = vmatpush1.msra.mxu0 0.0
        %477 = vmatprep.subr.mxu0 0.0
        %478 = vmatpush1.msra.mxu0 0.0
        %479 = vmatprep.subr.mxu0 0.0
        %480 = vmatpush1.msra.mxu0 0.0
        %481 = vmatprep.subr.mxu0 0.0
        %482 = vmatpush1.msra.mxu0 0.0
        %483 = vmatprep.subr.mxu0 0.0
        %484 = vmatpush1.msra.mxu0 0.0
        %485 = vmatprep.subr.mxu0 0.0
        %486 = vmatpush1.msra.mxu0 0.0
        %487 = vmatprep.subr.mxu0 0.0
        %488 = vmatpush1.msra.mxu0 0.0
        %489 = vmatprep.subr.mxu0 0.0
        %490 = vmatpush1.msra.mxu0 0.0
        %491 = vmatprep.subr.mxu0 0.0
        %492 = vmatpush1.msra.mxu0 0.0
        %493 = vmatprep.subr.mxu0 0.0
        %494 = vmatpush1.msra.mxu0 0.0
        %495 = vmatprep.subr.mxu0 0.0
        %496 = vmatpush1.msra.mxu0 0.0
        %497 = vmatprep.subr.mxu0 0.0
        %498 = vmatpush1.msra.mxu0 0.0
        %499 = vmatprep.mubr.f32.mxu0 0.0
        %500 = vmatmul.mubr.f32.gmra.mrb[0].mxu0 %v430
        %v501 = vpop.f32.mrb[0].mxu0
        %v502 = vadd.f32 0.0, %v501
        %v503 = vpop.f32.mrb[0].mxu0
        %504 = vdwg.mxu0
        %v505 = vld [vmem:[%s316] sm:$0xff]
        %v507 = vcombine.high %v505, %v505
        %v509 = vsel %vm351, %v502, 0
        %v511 = vsel %vm355, %v505, 0
        %v513 = vsel %vm355, %v507, 0
        %515 = vmatprep.subr.mxu0 %v513
        %516 = vmatpush1.msra.mxu0 %v511
        %517 = vmatprep.subr.mxu0 0.0
        %518 = vmatpush1.msra.mxu0 0.0
        %519 = vmatprep.subr.mxu0 0.0
        %520 = vmatpush1.msra.mxu0 0.0
        %521 = vmatprep.subr.mxu0 0.0
        %522 = vmatpush1.msra.mxu0 0.0
        %523 = vmatprep.subr.mxu0 0.0
        %524 = vmatpush1.msra.mxu0 0.0
        %525 = vmatprep.subr.mxu0 0.0
        %526 = vmatpush1.msra.mxu0 0.0
        %527 = vmatprep.subr.mxu0 0.0
        %528 = vmatpush1.msra.mxu0 0.0
        %529 = vmatprep.subr.mxu0 0.0
        %530 = vmatpush1.msra.mxu0 0.0
        %531 = vmatprep.subr.mxu0 0.0
        %532 = vmatpush1.msra.mxu0 0.0
        %533 = vmatprep.subr.mxu0 0.0
        %534 = vmatpush1.msra.mxu0 0.0
        %535 = vmatprep.subr.mxu0 0.0
        %536 = vmatpush1.msra.mxu0 0.0
        %537 = vmatprep.subr.mxu0 0.0
        %538 = vmatpush1.msra.mxu0 0.0
        %539 = vmatprep.subr.mxu0 0.0
        %540 = vmatpush1.msra.mxu0 0.0
        %541 = vmatprep.subr.mxu0 0.0
        %542 = vmatpush1.msra.mxu0 0.0
        %543 = vmatprep.subr.mxu0 0.0
        %544 = vmatpush1.msra.mxu0 0.0
        %545 = vmatprep.subr.mxu0 0.0
        %546 = vmatpush1.msra.mxu0 0.0
        %547 = vmatprep.subr.mxu0 0.0
        %548 = vmatpush1.msra.mxu0 0.0
        %549 = vmatprep.subr.mxu0 0.0
        %550 = vmatpush1.msra.mxu0 0.0
        %551 = vmatprep.subr.mxu0 0.0
        %552 = vmatpush1.msra.mxu0 0.0
        %553 = vmatprep.subr.mxu0 0.0
        %554 = vmatpush1.msra.mxu0 0.0
        %555 = vmatprep.subr.mxu0 0.0
        %556 = vmatpush1.msra.mxu0 0.0
        %557 = vmatprep.subr.mxu0 0.0
        %558 = vmatpush1.msra.mxu0 0.0
        %559 = vmatprep.subr.mxu0 0.0
        %560 = vmatpush1.msra.mxu0 0.0
        %561 = vmatprep.subr.mxu0 0.0
        %562 = vmatpush1.msra.mxu0 0.0
        %563 = vmatprep.subr.mxu0 0.0
        %564 = vmatpush1.msra.mxu0 0.0
        %565 = vmatprep.subr.mxu0 0.0
        %566 = vmatpush1.msra.mxu0 0.0
        %567 = vmatprep.subr.mxu0 0.0
        %568 = vmatpush1.msra.mxu0 0.0
        %569 = vmatprep.subr.mxu0 0.0
        %570 = vmatpush1.msra.mxu0 0.0
        %571 = vmatprep.subr.mxu0 0.0
        %572 = vmatpush1.msra.mxu0 0.0
        %573 = vmatprep.subr.mxu0 0.0
        %574 = vmatpush1.msra.mxu0 0.0
        %575 = vmatprep.subr.mxu0 0.0
        %576 = vmatpush1.msra.mxu0 0.0
        %577 = vmatprep.subr.mxu0 0.0
        %578 = vmatpush1.msra.mxu0 0.0
        %579 = vmatprep.mubr.f32.mxu0 0.0
        %580 = vmatmul.mubr.f32.gmra.mrb[0].mxu0 %v509
        %v581 = vpop.f32.mrb[0].mxu0
        %v582 = vadd.f32 0.0, %v581
        %v583 = vpop.f32.mrb[0].mxu0
        %v584 = vadd.f32 0.0, %v583
        %585 = vdwg.mxu0
        %v588 = vcombine.low %v582, %v584
        %590 = vst [vmem:[%s307] sm:$0xff] %v588
        %s591 = sand.u32 %s177, 1
        %s592 = scalar_lea.sflag [#allocation4], %s591
        %s593 = sand.u32 %s177, 1
        %s594 = smul.addr %s593, 8
        %s595 = scalar_lea.vmem [#allocation8], %s594
        // Predicated region
        $region57: #{tpu_custom_call.1} parent=43 // pred_check
          %p596 = pneg %p187
        $region58: #{tpu_custom_call.1} parent=43 // pred_check_branch
          %598 = sbr.rel (%p596) target = $region60
        $region59: #{tpu_custom_call.1} parent=43 // pred_region
          %s599 = smul.u32 2, %s27
          %s601 = ssub.s32 128, 128
          %602 = vsyncadd %s592, %s601
          %s603 = smul.addr %s26, 2
          %s604 = sadd.s32 %s599, %s603
          %s605 = smul.addr %s604, 64
          %s606 = scalar_lea.hbm %s6, %s605
          %s608 = sshll.u32 %s595, 4
          %s609 = int_to_ptr.vmem [resolvable:$true] %s608
          %611 = dma.vmem_to_hbm [thread:$0]  %s609, 128, %s606, %s592
        $region60: #{tpu_custom_call.1} parent=43 // pred_fallthru
          _
      $region44: #{tpu_custom_call.1} parent=5 // pred_fallthru
        _
      %p612 = scmp.le.s32.totalorder 2, %s17
      // Predicated region
      $region61: #{tpu_custom_call.1} parent=5 // pred_check
        %p613 = pneg %p612
      $region62: #{tpu_custom_call.1} parent=5 // pred_check_branch
        %615 = sbr.rel (%p613) target = $region64
      $region63: #{tpu_custom_call.1} parent=5 // pred_region
        %s616 = ssub.s32 %s17, 2
        // Predicated region
        $region65: #{tpu_custom_call.1} parent=63 // pred_check
          %p617 = pneg %p193
        $region66: #{tpu_custom_call.1} parent=63 // pred_check_branch
          %619 = sbr.rel (%p617) target = $region68
        $region67: #{tpu_custom_call.1} parent=63 // pred_region
          %s620 = sand.u32 %s178, 1
          %s621 = scalar_lea.sflag [#allocation4], %s620
          %s622 = sand.u32 %s178, 1
          %s623 = smul.addr %s622, 8
          %s624 = scalar_lea.vmem [#allocation8], %s623
          %625 = dma.done %s621, 128
        $region68: #{tpu_custom_call.1} parent=63 // pred_fallthru
          _
      $region64: #{tpu_custom_call.1} parent=5 // pred_fallthru
        _
    $region6: #{tpu_custom_call.1} parent=1 // loop_footer
      %s21 = sadd.s32 1, %s17
    $region7: #{tpu_custom_call.1} parent=1 // loop_footer_branch
      %16 = sbr.rel target = $region3
    $region8: #{tpu_custom_call.1} parent=1 // loop_exit
      _
    %626 = vsyncpa [#allocation3], 1
    %s627 = scalar_lea.sflag [#allocation3], 1
    %628 = vsyncpa %s627, 1
    %629 = vsyncpa [#allocation6], 1
    %630 = vsyncpa [#allocation4], 1
    %s631 = scalar_lea.sflag [#allocation4], 1
    %632 = vsyncpa %s631, 1

</llo_original>
